<compile_context>
chip_gen: v5e
topology: v5e:2x2
jax: 0.10.0
libtpu: 0.0.40
codegen_flags: <defaults>
</compile_context>

<pallas_src>
import functools

import jax
import jax.numpy as jnp
from jax.experimental import pallas as pl
from jax.experimental.pallas import tpu as pltpu

E_PAD = 128      # env lanes (num_envs <= 128)
LANE = 128
SUBLANE = 8


def _round_up(x, m):
    return -(-x // m) * m


def _irm_env_stats_kernel(logits_ref, packed_ref, stats_ref, *,
                          batch_size, tile_rows, tiles_per_core, e_pad):
    """Accumulate per-environment [sum(CE); count] over one batch tile.

    stats_ref is a (1, 2, e_pad) f32 accumulator resident across the
    (arbitrary) per-core tile axis: row 0 = sum of per-example CE per env,
    row 1 = valid-sample count per env.
    """
    core = pl.program_id(0)
    step = pl.program_id(1)

    # Initialise this core's resident accumulator on its first tile.
    @pl.when(step == 0)
    def _():
        stats_ref[...] = jnp.zeros_like(stats_ref)

    # ---- per-example cross entropy via lane-axis log-sum-exp --------------
    x_raw = logits_ref[...]                               # (TB, C) native dtype
    x = x_raw.astype(jnp.float32)
    tb, c = x.shape
    m = jnp.max(x, axis=-1, keepdims=True)                # XLU
    lse = m + jnp.log(jnp.sum(jnp.exp(x - m), axis=-1, keepdims=True))

    # labels/envs arrive packed into one int32 column: env << 16 | label.
    pk = packed_ref[...]                                  # (TB, 1) int32
    labels = pk & 0xFFFF
    envs = pk >> 16                                       # values are >= 0

    # Label-logit pick in the native dtype (exact: one non-zero per row);
    # halves the VPU passes for bf16 inputs on v6e/v7x.
    cls_iota = jax.lax.broadcasted_iota(jnp.int32, (tb, c), 1)
    lbl = jnp.sum(jnp.where(cls_iota == labels, x_raw, jnp.zeros_like(x_raw)),
                  axis=-1, keepdims=True).astype(jnp.float32)
    ce = lse - lbl                                        # (TB, 1)

    # ---- mask rows past the true batch size (ragged / padded tiles) -------
    t = core * tiles_per_core + step                      # global tile index
    row = jax.lax.broadcasted_iota(jnp.int32, (tb, 1), 0)
    valid = (t * tile_rows + row) < batch_size            # (TB, 1) bool
    valid_f = valid.astype(jnp.float32)
    ce_masked = jnp.where(valid, ce, 0.0)                 # guards inf/nan rows

    # ---- per-env scatter-reduce on the (otherwise idle) MXU ----------------
    #   partial[0, e] = sum_r ce_masked[r] * onehot[r, e]   (sum of CE per env)
    #   partial[1, e] = sum_r valid[r]     * onehot[r, e]   (count per env)
    two_iota = jax.lax.broadcasted_iota(jnp.int32, (tb, 2), 1)
    lhs = jnp.where(two_iota == 0, ce_masked, valid_f)    # (TB, 2)
    env_iota = jax.lax.broadcasted_iota(jnp.int32, (tb, e_pad), 1)
    onehot = (envs == env_iota).astype(jnp.float32)       # (TB, E_PAD)
    partial = jax.lax.dot_general(
        lhs, onehot,
        dimension_numbers=(((0,), (0,)), ((), ())),       # lhs^T @ onehot
        preferred_element_type=jnp.float32)               # (2, E_PAD)
    stats_ref[...] += partial.reshape(1, 2, e_pad)


def enhanced_irm_loss(logits, labels, environments, env_weights_param, *,
                      penalty_weight=1.0, num_envs=7,
                      semantic_adapter=None, semantic_info=None,
                      block_rows=None):
    """Forward pass of EnhancedIRMLossWithSemantics. Returns a scalar."""
    B, C = logits.shape
    assert num_envs <= E_PAD, "num_envs must be <= 128"
    assert C < (1 << 16), "class count must fit in 16 bits for packing"

    # Pack env/label into one int32 column (halves the lane-padded side DMA).
    packed = (environments.reshape(B).astype(jnp.int32) * (1 << 16)
              + labels.reshape(B).astype(jnp.int32)).reshape(B, 1)

    # ---- generation-aware tile sizing --------------------------------------
    itemsize = jnp.dtype(logits.dtype).itemsize
    try:
        vmem_cap = int(pltpu.get_tpu_info().vmem_capacity_bytes)
    except Exception:  # emulator / unexpected backend: assume the smallest VMEM
        vmem_cap = 64 << 20
    budget = int(0.70 * vmem_cap)
    # Per batch-row VMEM cost: double-buffered logits row + the packed int32
    # column, which pads to 128 lanes in VMEM (x2 pipeline buffers each).
    row_bytes = 2 * C * itemsize + 2 * LANE * 4
    max_tb = max(SUBLANE, (budget // row_bytes) // SUBLANE * SUBLANE)
    cap = max_tb if block_rows is None else max(SUBLANE, min(block_rows, max_tb))

    # Split batch tiles across 2 core-slots (v7x dual TensorCore; harmless on
    # single-TC v5e/v6e where the parallel axis just serialises).
    num_cores = 2 if B >= 2 * SUBLANE else 1
    tb = min(cap, pl.cdiv(B, num_cores))
    if tb >= B:
        tb = B                                   # single full-dim tile
    else:
        tb = _round_up(tb, SUBLANE)              # (8,128) sublane rule
        if tb >= B:
            tb = B
    num_tiles = pl.cdiv(B, tb)
    if num_tiles < 2:
        num_cores = 1
    tiles_per_core = pl.cdiv(num_tiles, num_cores)
    last_tile = num_tiles - 1
    padded_grid = num_cores * tiles_per_core != num_tiles

    def tile_map(c, i):
        t = c * tiles_per_core + i
        if padded_grid:
            # Padding steps re-read the last real tile; the kernel masks all
            # of their rows (global offset >= B) so they contribute nothing.
            t = jnp.minimum(t, last_tile)
        return (t, 0)

    footprint = (2 * tb * C * itemsize           # double-buffered logits tile
                 + 2 * tb * LANE * 4             # packed column, lane-padded
                 + num_cores * 2 * E_PAD * 4)    # resident accumulators
    vmem_limit = int(min(max(footprint + (4 << 20), 16 << 20), vmem_cap))

    cost = pl.CostEstimate(
        flops=6 * B * C + 4 * B * E_PAD,
        transcendentals=B * C + B,
        bytes_accessed=B * C * itemsize + B * 4 + num_cores * 2 * E_PAD * 4)

    kernel = functools.partial(_irm_env_stats_kernel, batch_size=B,
                               tile_rows=tb, tiles_per_core=tiles_per_core,
                               e_pad=E_PAD)

    stats = pl.pallas_call(
        kernel,
        out_shape=jax.ShapeDtypeStruct((num_cores, 2, E_PAD), jnp.float32),
        grid=(num_cores, tiles_per_core),
        in_specs=[
            pl.BlockSpec((tb, C), tile_map),     # logits (bf16/f32 in HBM)
            pl.BlockSpec((tb, 1), tile_map),     # packed env<<16 | label
        ],
        out_specs=pl.BlockSpec((1, 2, E_PAD), lambda c, i: (c, 0, 0)),
        compiler_params=pltpu.CompilerParams(
            dimension_semantics=("parallel", "arbitrary"),
            vmem_limit_bytes=vmem_limit,
        ),
        cost_estimate=cost,
    )(logits, packed)

    # ---- O(num_envs) finalize in plain JAX ---------------------------------
    w = env_weights_param.astype(jnp.float32)
    if semantic_adapter is not None and semantic_info is not None:
        W, bias = semantic_adapter               # torch Linear: y = x @ W.T + b
        w = w @ W.astype(jnp.float32).T + bias.astype(jnp.float32)
    env_w = jax.nn.softmax(w)                    # [num_envs]

    totals = stats.sum(axis=0)                   # combine per-core partials
    s = totals[0, :num_envs]
    cnt = totals[1, :num_envs]
    has = cnt > 0.0                              # skip empty environments
    mean = jnp.where(has, s / jnp.maximum(cnt, 1.0), 0.0)
    per_env = env_w * (mean + penalty_weight * (jnp.abs(mean) - 1.0) ** 2)
    loss_plus_penalty = jnp.sum(jnp.where(has, per_env, 0.0))

    entropy_reg = -jnp.sum(env_w * jnp.log(env_w + 1e-8))
    return loss_plus_penalty - 0.1 * entropy_reg


def _reference(logits, labels, environments, env_weights_param,
               penalty_weight, num_envs):
    """Pure-JAX mirror of the PyTorch forward (same bf16->f32 upcast)."""
    x = logits.astype(jnp.float32)
    logp = jax.nn.log_softmax(x, axis=-1)
    ce = -jnp.take_along_axis(logp, labels[:, None].astype(jnp.int32), axis=-1)[:, 0]
    w = jax.nn.softmax(env_weights_param.astype(jnp.float32))
    loss = 0.0
    penalty = 0.0
    for e in range(num_envs):
        mask = environments == e
        cnt = jnp.sum(mask)
        m = jnp.where(cnt > 0, jnp.sum(jnp.where(mask, ce, 0.0)) / jnp.maximum(cnt, 1), 0.0)
        loss = loss + jnp.where(cnt > 0, w[e] * m, 0.0)
        penalty = penalty + jnp.where(cnt > 0, w[e] * (jnp.abs(m) - 1.0) ** 2, 0.0)
    ent = -jnp.sum(w * jnp.log(w + 1e-8))
    return loss + penalty_weight * penalty - 0.1 * ent


if __name__ == "__main__":
    key = jax.random.PRNGKey(0)
    B, C, E = 50, 12, 7
    k1, k2, k3, k4 = jax.random.split(key, 4)

    logits_f32 = jax.random.normal(k1, (B, C), dtype=jnp.float32)
    logits_bf16 = logits_f32.astype(jnp.bfloat16)   # bf16 HBM: half DMA traffic
    labels = jax.random.randint(k2, (B,), 0, C, dtype=jnp.int32)
    # envs drawn from [0, E-1) so env E-1 is empty -> exercises skip-empty path
    environments = jax.random.randint(k3, (B,), 0, E - 1, dtype=jnp.int32)
    env_weights_param = jax.random.normal(k4, (E,), dtype=jnp.float32)

    cases = [
        (logits_bf16, None),   # budget-driven tile, 2 core-slots, ragged tail
        (logits_bf16, 16),     # multi-tile-per-core resident accumulation
        (logits_bf16, 24),     # odd tile count -> clamped, fully-masked pad step
        (logits_f32, None),    # f32 input path
    ]
    for lg, br in cases:
        out = enhanced_irm_loss(lg, labels, environments, env_weights_param,
                                penalty_weight=1.0, num_envs=E, block_rows=br)
        out = jax.block_until_ready(out)
        ref = _reference(lg, labels, environments, env_weights_param, 1.0, E)
        assert bool(jnp.isfinite(out)), "kernel produced non-finite loss"
        assert abs(float(out) - float(ref)) <= 2e-2 * max(1.0, abs(float(ref))), \
            (br, float(out), float(ref))
    print("KERNEL_OK")
</pallas_src>

<mosaic_0001>
module attributes {stable_mosaic.version = 11 : i64} {
  func.func @_irm_env_stats_kernel(%arg0: i32, %arg1: i32, %arg2: memref<32x12xbf16, #tpu.memory_space<vmem>>, %arg3: memref<32x1xi32, #tpu.memory_space<vmem>>, %arg4: memref<1x2x128xf32, #tpu.memory_space<vmem>>) attributes {dimension_semantics = [#tpu.dimension_semantics<parallel>, #tpu.dimension_semantics<arbitrary>], iteration_bounds = array<i64: 2, 1>, scalar_prefetch = 0 : i64, scratch_operands = 0 : i64, tpu.core_type = #tpu.core_type<tc>, window_params = [{transform_indices = @transform_0, window_bounds = array<i64: 32, 12>}, {transform_indices = @transform_1, window_bounds = array<i64: 32, 1>}, {transform_indices = @transform_2, window_bounds = array<i64: 1, 2, 128>}]} {
    %c0_i32 = arith.constant 0 : i32
    %0 = arith.cmpi eq, %arg1, %c0_i32 : i32
    %1 = arith.extui %0 : i1 to i32
    %c0_i32_0 = arith.constant 0 : i32
    %2 = arith.cmpi ne, %1, %c0_i32_0 : i32
    scf.if %2 {
      %cst_16 = arith.constant 0.000000e+00 : f32
      %60 = vector.broadcast %cst_16 : f32 to vector<1x2x128xf32>
      %c0_17 = arith.constant 0 : index
      %c0_18 = arith.constant 0 : index
      %c0_19 = arith.constant 0 : index
      %61 = vector.load %arg4[%c0_17, %c0_18, %c0_19] : memref<1x2x128xf32, #tpu.memory_space<vmem>>, vector<1x2x128xf32>
      tpu.vector_store %arg4[%c0_17, %c0_18, %c0_19], %60 {strides = array<i32>} : memref<1x2x128xf32, #tpu.memory_space<vmem>>, vector<1x2x128xf32>,
    } else {
    }
    %c0 = arith.constant 0 : index
    %c0_1 = arith.constant 0 : index
    %3 = vector.load %arg2[%c0, %c0_1] : memref<32x12xbf16, #tpu.memory_space<vmem>>, vector<32x12xbf16>
    %4 = arith.extf %3 : vector<32x12xbf16> to vector<32x12xf32>
    %cst = arith.constant dense<0xFF800000> : vector<32xf32>
    %5 = vector.multi_reduction <maximumf>, %4, %cst [1] : vector<32x12xf32> to vector<32xf32>
    %6 = vector.shape_cast %5 : vector<32xf32> to vector<32x1xf32>
    %7 = vector.broadcast %6 : vector<32x1xf32> to vector<32x12xf32>
    %8 = arith.subf %4, %7 : vector<32x12xf32>
    %9 = math.exp %8 : vector<32x12xf32>
    %cst_2 = arith.constant dense<0.000000e+00> : vector<32xf32>
    %10 = vector.multi_reduction <add>, %9, %cst_2 [1] : vector<32x12xf32> to vector<32xf32>
    %11 = vector.shape_cast %10 : vector<32xf32> to vector<32x1xf32>
    %12 = math.log %11 : vector<32x1xf32>
    %13 = arith.addf %6, %12 : vector<32x1xf32>
    %c0_3 = arith.constant 0 : index
    %c0_4 = arith.constant 0 : index
    %14 = vector.load %arg3[%c0_3, %c0_4] : memref<32x1xi32, #tpu.memory_space<vmem>>, vector<32x1xi32>
    %c65535_i32 = arith.constant 65535 : i32
    %15 = vector.broadcast %c65535_i32 : i32 to vector<32x1xi32>
    %16 = arith.andi %14, %15 : vector<32x1xi32>
    %c16_i32 = arith.constant 16 : i32
    %17 = vector.broadcast %c16_i32 : i32 to vector<32x1xi32>
    %18 = arith.shrsi %14, %17 : vector<32x1xi32>
    %19 = tpu.iota {dimensions = array<i32: 1>} : vector<32x12xi32>
    %20 = vector.broadcast %16 : vector<32x1xi32> to vector<32x12xi32>
    %21 = arith.cmpi eq, %19, %20 : vector<32x12xi32>
    %cst_5 = arith.constant 0.000000e+00 : bf16
    %22 = vector.broadcast %cst_5 : bf16 to vector<32x12xbf16>
    %23 = arith.select %21, %3, %22 : vector<32x12xi1>, vector<32x12xbf16>
    %24 = arith.extf %23 : vector<32x12xbf16> to vector<32x12xf32>
    %cst_6 = arith.constant dense<0.000000e+00> : vector<32xf32>
    %25 = vector.multi_reduction <add>, %24, %cst_6 [1] : vector<32x12xf32> to vector<32xf32>
    %26 = vector.shape_cast %25 : vector<32xf32> to vector<32x1xf32>
    %27 = arith.truncf %26 : vector<32x1xf32> to vector<32x1xbf16>
    %28 = arith.extf %27 : vector<32x1xbf16> to vector<32x1xf32>
    %29 = arith.subf %13, %28 : vector<32x1xf32>
    %c1_i32 = arith.constant 1 : i32
    %30 = arith.muli %arg0, %c1_i32 : i32
    %31 = arith.addi %30, %arg1 : i32
    %32 = tpu.iota {dimensions = array<i32: 0>} : vector<32x1xi32>
    %c32_i32 = arith.constant 32 : i32
    %33 = arith.muli %31, %c32_i32 : i32
    %34 = vector.broadcast %33 : i32 to vector<32x1xi32>
    %35 = arith.addi %34, %32 : vector<32x1xi32>
    %c50_i32 = arith.constant 50 : i32
    %36 = vector.broadcast %c50_i32 : i32 to vector<32x1xi32>
    %37 = arith.cmpi slt, %35, %36 : vector<32x1xi32>
    %38 = arith.extui %37 : vector<32x1xi1> to vector<32x1xi32>
    %39 = arith.sitofp %38 : vector<32x1xi32> to vector<32x1xf32>
    %cst_7 = arith.constant 0.000000e+00 : f32
    %40 = vector.broadcast %cst_7 : f32 to vector<32x1xf32>
    %41 = arith.select %37, %29, %40 : vector<32x1xi1>, vector<32x1xf32>
    %42 = tpu.iota {dimensions = array<i32: 1>} : vector<32x2xi32>
    %c0_i32_8 = arith.constant 0 : i32
    %43 = vector.broadcast %c0_i32_8 : i32 to vector<32x2xi32>
    %44 = arith.cmpi eq, %42, %43 : vector<32x2xi32>
    %45 = vector.shape_cast %41 : vector<32x1xf32> to vector<32x1xf32>
    %46 = vector.broadcast %45 : vector<32x1xf32> to vector<32x2xf32>
    %47 = vector.shape_cast %39 : vector<32x1xf32> to vector<32x1xf32>
    %48 = vector.broadcast %47 : vector<32x1xf32> to vector<32x2xf32>
    %49 = arith.select %44, %46, %48 : vector<32x2xi1>, vector<32x2xf32>
    %50 = tpu.iota {dimensions = array<i32: 1>} : vector<32x128xi32>
    %51 = vector.broadcast %18 : vector<32x1xi32> to vector<32x128xi32>
    %52 = arith.cmpi eq, %51, %50 : vector<32x128xi32>
    %53 = arith.extui %52 : vector<32x128xi1> to vector<32x128xi32>
    %54 = arith.sitofp %53 : vector<32x128xi32> to vector<32x128xf32>
    %cst_9 = arith.constant dense<0.000000e+00> : vector<2x128xf32>
    %55 = tpu.matmul %49, %54, %cst_9 {dimension_numbers = #tpu.dot_dimension_numbers<[0], [0], [1], [1], [0, 1, 1, 1], [], []>} : vector<32x2xf32>, vector<32x128xf32>, vector<2x128xf32> -> vector<2x128xf32>
    %c0_10 = arith.constant 0 : index
    %c0_11 = arith.constant 0 : index
    %c0_12 = arith.constant 0 : index
    %56 = vector.load %arg4[%c0_10, %c0_11, %c0_12] : memref<1x2x128xf32, #tpu.memory_space<vmem>>, vector<1x2x128xf32>
    %57 = vector.shape_cast %55 : vector<2x128xf32> to vector<1x2x128xf32>
    %58 = arith.addf %56, %57 : vector<1x2x128xf32>
    %c0_13 = arith.constant 0 : index
    %c0_14 = arith.constant 0 : index
    %c0_15 = arith.constant 0 : index
    %59 = vector.load %arg4[%c0_13, %c0_14, %c0_15] : memref<1x2x128xf32, #tpu.memory_space<vmem>>, vector<1x2x128xf32>
    tpu.vector_store %arg4[%c0_13, %c0_14, %c0_15], %58 {strides = array<i32>} : memref<1x2x128xf32, #tpu.memory_space<vmem>>, vector<1x2x128xf32>,
    return
  }
  func.func @transform_0(%arg0: i32, %arg1: i32) -> (i32, i32) {
    %c1_i32 = arith.constant 1 : i32
    %0 = arith.muli %arg0, %c1_i32 : i32
    %1 = arith.addi %0, %arg1 : i32
    %c0_i32 = arith.constant 0 : i32
    %c0_i32_0 = arith.constant 0 : i32
    return %1, %c0_i32 : i32, i32
  }
  func.func @transform_1(%arg0: i32, %arg1: i32) -> (i32, i32) {
    %c1_i32 = arith.constant 1 : i32
    %0 = arith.muli %arg0, %c1_i32 : i32
    %1 = arith.addi %0, %arg1 : i32
    %c0_i32 = arith.constant 0 : i32
    %c0_i32_0 = arith.constant 0 : i32
    return %1, %c0_i32 : i32, i32
  }
  func.func @transform_2(%arg0: i32, %arg1: i32) -> (i32, i32, i32) {
    %c0_i32 = arith.constant 0 : i32
    %c0_i32_0 = arith.constant 0 : i32
    %c0_i32_1 = arith.constant 0 : i32
    return %arg0, %c0_i32, %c0_i32_0 : i32, i32, i32
  }
}

</mosaic_0001>

<llo_original>
// kernel: tpu_custom_call.1
$region0: #{tpu_custom_call.1}
  #allocation0 [shape = 'u32[]', space=smem, size = 0x4, offset = 0x4, fixed_abs, tag = 'smem constant byte address 0x4 - core index']
  #allocation1 [shape = 'u32[72,128]{1,0:T(1,128)}', space=vmem, size = 0x9000, scoped, tag = 'internal scratch']
  %s0 = inlined_call_operand.vmem [shape: bf16[50,12], index: 0, kind: input, shape index: {}]
  %s1 = inlined_call_operand.vmem [shape: s32[50,1], index: 1, kind: input, shape index: {}]
  %s2 = inlined_call_operand.hbm [shape: f32[2,2,128], index: 2, kind: output, shape index: {}]
  %s3 = sld [smem:[#allocation0]]
  $region45: #{tpu_custom_call.1} parent=0
    _
  %s5 = ssub.s32 1, %s3
  %s6 = scalar_select 0, %s5, %s3
  $region1: #{tpu_custom_call.1} parent=0
    #allocation2 [shape = 'u8[2048]{0}', space=vmem, size = 0x800, scoped, tag = 'output window, operand 0']
    #allocation3 [shape = 's32[2]{0}', space=sflag, size = 0x8, scoped, tag = 'scoped memory for tpu_custom_call.1']
    %7 = vsyncpa [#allocation3], 0
    %s8 = scalar_lea.sflag [#allocation3], 1
    %9 = vsyncpa %s8, 0
    loop: start=0, step=1, limit=4
    $region2: #{tpu_custom_call.1} parent=1 // loop_pre_header
      _
    $region3: #{tpu_custom_call.1} parent=1 // loop_header
      %s11 = sphi 0, %s15
      %p12 = scmp.ge.s32.totalorder %s11, 4
      %s18 = sphi 0, %s30
      %s19 = sphi 0, %s26
      %s20 = sphi 0, %s18
      %s21 = sphi 0, %s19
      %s22 = sphi 0, %s20
      %s23 = sphi 0, %s21
      %s35 = sphi 0, %s37
      %s38 = sphi 0, %s35
      %s39 = sphi 0, %s38
      %s55 = sphi 0, %s39
      %s63 = sphi 0, %s65
      %s66 = sphi 0, %s63
      %s67 = sphi 0, %s66
      %s83 = sphi 0, %s67
      %s89 = sphi 0, %s91
      %s92 = sphi 0, %s89
      %s93 = sphi 0, %s92
      %s109 = sphi 0, %s93
    $region4: #{tpu_custom_call.1} parent=1 // loop_header_branch
      %14 = sbr.rel (%p12) target = $region8
    $region5: #{tpu_custom_call.1} parent=1 // loop_body
      %s16 = ssub.s32 %s11, 1
      %s17 = ssub.s32 %s11, 2
      %s24 = sadd.s32 1, %s19
      %p25 = scmp.ge.s32.totalorder %s24, 1
      %s26 = scalar_select %p25, 0, %s24
      %s27 = sadd.s32 1, %s18
      %s28 = scalar_select %p25, %s27, %s18
      %p29 = scmp.ge.s32.totalorder %s28, 2
      %s30 = scalar_select %p29, 0, %s28
      %s31 = sadd.s32 %s18, %s19
      %s32 = sadd.s32 %s30, %s26
      %s33 = ssub.s32 %s31, %s32
      %p34 = scmp.eq.s32.totalorder %s33, 0
      %s36 = sadd.s32 %s35, 1
      %s37 = scalar_select %p34, %s35, %s36
      %p40 = pneg %p34
      %p41 = scmp.eq.s32.totalorder %s11, 1
      %p42 = por %p40, %p41
      %p43 = scmp.ne.s32.totalorder %s35, %s38
      %p44 = scmp.eq.s32.totalorder %s11, 0
      %p45 = por %p43, %p44
      %p46 = scmp.ne.s32.totalorder %s35, %s38
      %p47 = scmp.eq.s32.totalorder %s16, 1
      %p48 = por %p46, %p47
      %p49 = scmp.ne.s32.totalorder %s38, %s39
      %p50 = scmp.eq.s32.totalorder %s16, 0
      %p51 = por %p49, %p50
      %p52 = scmp.ne.s32.totalorder %s38, %s39
      %p53 = scmp.eq.s32.totalorder %s17, 1
      %p54 = por %p52, %p53
      %p56 = scmp.ne.s32.totalorder %s39, %s55
      %p57 = scmp.eq.s32.totalorder %s17, 0
      %p58 = por %p56, %p57
      %s59 = sadd.s32 %s18, %s19
      %s60 = sadd.s32 %s30, %s26
      %s61 = ssub.s32 %s59, %s60
      %p62 = scmp.eq.s32.totalorder %s61, 0
      %s64 = sadd.s32 %s63, 1
      %s65 = scalar_select %p62, %s63, %s64
      %p68 = pneg %p62
      %p69 = scmp.eq.s32.totalorder %s11, 1
      %p70 = por %p68, %p69
      %p71 = scmp.ne.s32.totalorder %s63, %s66
      %p72 = scmp.eq.s32.totalorder %s11, 0
      %p73 = por %p71, %p72
      %p74 = scmp.ne.s32.totalorder %s63, %s66
      %p75 = scmp.eq.s32.totalorder %s16, 1
      %p76 = por %p74, %p75
      %p77 = scmp.ne.s32.totalorder %s66, %s67
      %p78 = scmp.eq.s32.totalorder %s16, 0
      %p79 = por %p77, %p78
      %p80 = scmp.ne.s32.totalorder %s66, %s67
      %p81 = scmp.eq.s32.totalorder %s17, 1
      %p82 = por %p80, %p81
      %p84 = scmp.ne.s32.totalorder %s67, %s83
      %p85 = scmp.eq.s32.totalorder %s17, 0
      %p86 = por %p84, %p85
      %s87 = ssub.s32 %s18, %s30
      %p88 = scmp.eq.s32.totalorder %s87, 0
      %s90 = sadd.s32 %s89, 1
      %s91 = scalar_select %p88, %s89, %s90
      %p94 = pneg %p88
      %p95 = scmp.eq.s32.totalorder %s11, 1
      %p96 = por %p94, %p95
      %p97 = scmp.ne.s32.totalorder %s89, %s92
      %p98 = scmp.eq.s32.totalorder %s11, 0
      %p99 = por %p97, %p98
      %p100 = scmp.ne.s32.totalorder %s89, %s92
      %p101 = scmp.eq.s32.totalorder %s16, 1
      %p102 = por %p100, %p101
      %p103 = scmp.ne.s32.totalorder %s92, %s93
      %p104 = scmp.eq.s32.totalorder %s16, 0
      %p105 = por %p103, %p104
      %p106 = scmp.ne.s32.totalorder %s92, %s93
      %p107 = scmp.eq.s32.totalorder %s17, 1
      %p108 = por %p106, %p107
      %p110 = scmp.ne.s32.totalorder %s93, %s109
      %p111 = scmp.eq.s32.totalorder %s17, 0
      %p112 = por %p110, %p111
      %p113 = scmp.le.s32.totalorder 1, %s11
      %p114 = scmp.lt.s32.totalorder %s11, 3
      %p115 = pnand %p113, %p114
      %p116 = pneg %p115
      // Predicated region
      $region9: #{tpu_custom_call.1} parent=5 // pred_check
        _
      $region10: #{tpu_custom_call.1} parent=5 // pred_check_branch
        %118 = sbr.rel (%p115) target = $region12
      $region11: #{tpu_custom_call.1} parent=5 // pred_region
        %s119 = ssub.s32 %s11, 1
      $region12: #{tpu_custom_call.1} parent=5 // pred_fallthru
        _
      %p120 = scmp.lt.s32.totalorder %s11, 2
      // Predicated region
      $region13: #{tpu_custom_call.1} parent=5 // pred_check
        %p121 = pneg %p120
      $region14: #{tpu_custom_call.1} parent=5 // pred_check_branch
        %123 = sbr.rel (%p121) target = $region16
      $region15: #{tpu_custom_call.1} parent=5 // pred_region
        // Predicated region
        $region17: #{tpu_custom_call.1} parent=15 // pred_check
          %p124 = pneg %p45
        $region18: #{tpu_custom_call.1} parent=15 // pred_check_branch
          %126 = sbr.rel (%p124) target = $region20
        $region19: #{tpu_custom_call.1} parent=15 // pred_region
          %s127 = sadd.s32 %s18, %s19
          %s128 = smul.u32 4, %s127
          %s129 = ssub.s32 7, %s128
          %p130 = scmp.lt.s32.totalorder %s129, 4
          %s131 = scalar_select %p130, %s129, 4
          %s132 = smul.u32 4, %s131
          %p133 = scmp.lt.s32.totalorder %s128, 6
          %s134 = scalar_select %p133, %s128, 6
          %s135 = smul.addr %s134, 4
          %s136 = scalar_lea.vmem %s0, %s135
          %s137 = sadd.s32 %s18, %s19
          %s138 = smul.u32 4, %s137
          %s139 = ssub.s32 7, %s138
          %p140 = scmp.lt.s32.totalorder %s139, 4
          %s141 = scalar_select %p140, %s139, 4
          %s142 = smul.u32 4, %s141
        $region20: #{tpu_custom_call.1} parent=15 // pred_fallthru
          _
        // Predicated region
        $region21: #{tpu_custom_call.1} parent=15 // pred_check
          %p143 = pneg %p73
        $region22: #{tpu_custom_call.1} parent=15 // pred_check_branch
          %145 = sbr.rel (%p143) target = $region24
        $region23: #{tpu_custom_call.1} parent=15 // pred_region
          %s146 = sadd.s32 %s18, %s19
          %s147 = smul.u32 4, %s146
          %s148 = ssub.s32 7, %s147
          %p149 = scmp.lt.s32.totalorder %s148, 4
          %s150 = scalar_select %p149, %s148, 4
          %s151 = smul.u32 8, %s150
          %p152 = scmp.lt.s32.totalorder %s147, 6
          %s153 = scalar_select %p152, %s147, 6
          %s154 = smul.addr %s153, 8
          %s155 = scalar_lea.vmem %s1, %s154
          %s156 = sadd.s32 %s18, %s19
          %s157 = smul.u32 4, %s156
          %s158 = ssub.s32 7, %s157
          %p159 = scmp.lt.s32.totalorder %s158, 4
          %s160 = scalar_select %p159, %s158, 4
          %s161 = smul.u32 8, %s160
        $region24: #{tpu_custom_call.1} parent=15 // pred_fallthru
          _
      $region16: #{tpu_custom_call.1} parent=5 // pred_fallthru
        _
      %p162 = scmp.le.s32.totalorder 1, %s11
      %p163 = scmp.lt.s32.totalorder %s11, 3
      %p164 = pnand %p162, %p163
      %p165 = pneg %p164
      // Predicated region
      $region25: #{tpu_custom_call.1} parent=5 // pred_check
        _
      $region26: #{tpu_custom_call.1} parent=5 // pred_check_branch
        %167 = sbr.rel (%p164) target = $region28
      $region27: #{tpu_custom_call.1} parent=5 // pred_region
        %s168 = ssub.s32 %s11, 1
        %s169 = sadd.s32 %s20, %s21
        %s170 = smul.u32 4, %s169
        %s171 = ssub.s32 7, %s170
        %p172 = scmp.lt.s32.totalorder %s171, 4
        %s173 = scalar_select %p172, %s171, 4
        %s174 = smul.u32 4, %s173
        %p175 = scmp.lt.s32.totalorder %s170, 6
        %s176 = scalar_select %p175, %s170, 6
        %s177 = smul.addr %s176, 4
        %s178 = scalar_lea.vmem %s0, %s177
        %p179 = pneg %p51
        %p180 = pneg %p48
        %s181 = sadd.s32 %s20, %s21
        %s182 = smul.u32 4, %s181
        %s183 = ssub.s32 7, %s182
        %p184 = scmp.lt.s32.totalorder %s183, 4
        %s185 = scalar_select %p184, %s183, 4
        %s186 = smul.u32 8, %s185
        %p187 = scmp.lt.s32.totalorder %s182, 6
        %s188 = scalar_select %p187, %s182, 6
        %s189 = smul.addr %s188, 8
        %s190 = scalar_lea.vmem %s1, %s189
        %p191 = pneg %p79
        %p192 = pneg %p76
        %p193 = pneg %p105
        %p194 = pneg %p102
        %s195 = sand.u32 %s92, 1
        %s196 = scalar_lea.sflag [#allocation3], %s195
        %s197 = sand.u32 %s92, 1
        %s198 = smul.addr %s197, 2
        %s199 = scalar_lea.vmem [#allocation2], %s198
        %s200 = sadd.s32 %s20, %s21
        %s201 = smul.u32 4, %s200
        %s202 = ssub.s32 7, %s201
        %p203 = scmp.lt.s32.totalorder %s202, 4
        %s204 = scalar_select %p203, %s202, 4
        %s205 = smul.u32 4, %s204
        %p206 = scmp.lt.s32.totalorder %s201, 6
        %s207 = scalar_select %p206, %s201, 6
        %s208 = smul.addr %s207, 4
        %s209 = scalar_lea.vmem %s0, %s208
        %s210 = sadd.s32 %s20, %s21
        %s211 = smul.u32 4, %s210
        %s212 = ssub.s32 7, %s211
        %p213 = scmp.lt.s32.totalorder %s212, 4
        %s214 = scalar_select %p213, %s212, 4
        %s215 = smul.u32 4, %s214
        %s216 = sadd.s32 %s20, %s21
        %s217 = smul.u32 4, %s216
        %s218 = ssub.s32 7, %s217
        %p219 = scmp.lt.s32.totalorder %s218, 4
        %s220 = scalar_select %p219, %s218, 4
        %s221 = smul.u32 8, %s220
        %p222 = scmp.lt.s32.totalorder %s217, 6
        %s223 = scalar_select %p222, %s217, 6
        %s224 = smul.addr %s223, 8
        %s225 = scalar_lea.vmem %s1, %s224
        %s226 = sadd.s32 %s20, %s21
        %s227 = smul.u32 4, %s226
        %s228 = ssub.s32 7, %s227
        %p229 = scmp.lt.s32.totalorder %s228, 4
        %s230 = scalar_select %p229, %s228, 4
        %s231 = smul.u32 8, %s230
        %p233 = scmp.eq.s32.totalorder %s21, 0
        // Predicated region
        $region29: #{tpu_custom_call.1} parent=27 // pred_check
          %p234 = pneg %p233
        $region30: #{tpu_custom_call.1} parent=27 // pred_check_branch
          %236 = sbr.rel (%p234) target = $region32
        $region31: #{tpu_custom_call.1} parent=27 // pred_region
          %237 = vst [vmem:[%s199] sm:$0x3] 0.0
        $region32: #{tpu_custom_call.1} parent=27 // pred_fallthru
          _
        %v238 = vld [vmem:[%s209] sm:$0xf]
        %v239 = vld [vmem:[%s209 + $0x4] sm:$0xf]
        %v240 = vld [vmem:[%s209 + $0x8] sm:$0xf]
        %v241 = vld [vmem:[%s209 + $0xc] sm:$0xf]
        %v242 = vunpack.c.l.bf16 %v238
        %v243 = vunpack.c.l.bf16 %v239
        %v244 = vunpack.c.l.bf16 %v240
        %v245 = vunpack.c.l.bf16 %v241
        %vm246 = vcmask 97280
        %v247 = vsel %vm246, %v242, -inf
        %248 = vmax.xlane.f32.xlu0 %v247
        %v249 = vpop.xlane.xlu0 %248
        %v250 = vsel %vm246, %v243, -inf
        %251 = vmax.xlane.f32.xlu0 %v250
        %v252 = vpop.xlane.xlu0 %251
        %v253 = vsel %vm246, %v244, -inf
        %254 = vmax.xlane.f32.xlu0 %v253
        %v255 = vpop.xlane.xlu0 %254
        %v256 = vsel %vm246, %v245, -inf
        %257 = vmax.xlane.f32.xlu0 %v256
        %v258 = vpop.xlane.xlu0 %257
        %v259 = vsub.f32 %v242, %v249
        %v260 = vsub.f32 %v243, %v252
        %v261 = vsub.f32 %v244, %v255
        %v262 = vsub.f32 %v245, %v258
        %v263 = vmul.f32 %v259, 1.442695
        %v264 = vpow.pop %v263
        %v265 = vmul.f32 %v260, 1.442695
        %v266 = vpow.pop %v265
        %v267 = vmul.f32 %v261, 1.442695
        %v268 = vpow.pop %v267
        %v269 = vmul.f32 %v262, 1.442695
        %v270 = vpow.pop %v269
        %v271 = vsel %vm246, %v264, 0.0
        %272 = vadd.xlane.f32.xlu0 %v271
        %v273 = vpop.xlane.xlu0 %272
        %v274 = vsel %vm246, %v266, 0.0
        %275 = vadd.xlane.f32.xlu0 %v274
        %v276 = vpop.xlane.xlu0 %275
        %v277 = vsel %vm246, %v268, 0.0
        %278 = vadd.xlane.f32.xlu0 %v277
        %v279 = vpop.xlane.xlu0 %278
        %v280 = vsel %vm246, %v270, 0.0
        %281 = vadd.xlane.f32.xlu0 %v280
        %v282 = vpop.xlane.xlu0 %281
        %v283 = vlog2.pop %v273
        %v284 = vmul.f32 %v283, 0.6931472
        %v285 = vlog2.pop %v276
        %v286 = vmul.f32 %v285, 0.6931472
        %v287 = vlog2.pop %v279
        %v288 = vmul.f32 %v287, 0.6931472
        %v289 = vlog2.pop %v282
        %v290 = vmul.f32 %v289, 0.6931472
        %v291 = vadd.f32 %v249, %v284
        %v292 = vadd.f32 %v252, %v286
        %v293 = vadd.f32 %v255, %v288
        %v294 = vadd.f32 %v258, %v290
        %v295 = vld [vmem:[%s225] sm:$0xff]
        %v296 = vld [vmem:[%s225 + $0x8] sm:$0xff]
        %v297 = vld [vmem:[%s225 + $0x10] sm:$0xff]
        %v298 = vld [vmem:[%s225 + $0x18] sm:$0xff]
        %v299 = vand.u32 %v295, 65535
        %v300 = vand.u32 %v296, 65535
        %v301 = vand.u32 %v297, 65535
        %v302 = vand.u32 %v298, 65535
        %v303 = vshra.s32 %v295, 16
        %v304 = vshra.s32 %v296, 16
        %v305 = vshra.s32 %v297, 16
        %v306 = vshra.s32 %v298, 16
        %v307 = vlaneseq
        %v308 = vand.u32 %v307, 127
        %309 = vset.pattern.permute.xlu0 0
        %310 = vperm.xlu0 %309, %v299
        %v311 = vpop.permute.xlu0 %310
        %312 = vset.pattern.permute.xlu0 0
        %313 = vperm.xlu0 %312, %v300
        %v314 = vpop.permute.xlu0 %313
        %315 = vset.pattern.permute.xlu0 0
        %316 = vperm.xlu0 %315, %v301
        %v317 = vpop.permute.xlu0 %316
        %318 = vset.pattern.permute.xlu0 0
        %319 = vperm.xlu0 %318, %v302
        %v320 = vpop.permute.xlu0 %319
        %vm321 = vcmp.eq.s32.totalorder %v308, %v311
        %vm322 = vcmp.eq.s32.totalorder %v308, %v314
        %vm323 = vcmp.eq.s32.totalorder %v308, %v317
        %vm324 = vcmp.eq.s32.totalorder %v308, %v320
        %vm325 = vmpackc.low %vm321, %vm321
        %vm326 = vmpackc.low %vm322, %vm322
        %vm327 = vmpackc.low %vm323, %vm323
        %vm328 = vmpackc.low %vm324, %vm324
        %v329 = vsel %vm325, %v238, 0
        %v330 = vsel %vm326, %v239, 0
        %v331 = vsel %vm327, %v240, 0
        %v332 = vsel %vm328, %v241, 0
        %v333 = vunpack.c.l.bf16 %v329
        %v334 = vunpack.c.l.bf16 %v330
        %v335 = vunpack.c.l.bf16 %v331
        %v336 = vunpack.c.l.bf16 %v332
        %v337 = vsel %vm246, %v333, 0.0
        %338 = vadd.xlane.f32.xlu0 %v337
        %v339 = vpop.xlane.xlu0 %338
        %v340 = vsel %vm246, %v334, 0.0
        %341 = vadd.xlane.f32.xlu0 %v340
        %v342 = vpop.xlane.xlu0 %341
        %v343 = vsel %vm246, %v335, 0.0
        %344 = vadd.xlane.f32.xlu0 %v343
        %v345 = vpop.xlane.xlu0 %344
        %v346 = vsel %vm246, %v336, 0.0
        %347 = vadd.xlane.f32.xlu0 %v346
        %v348 = vpop.xlane.xlu0 %347
        %v349 = vpack.c.bf16 %v339, %v339
        %v350 = vpack.c.bf16 %v342, %v342
        %v351 = vpack.c.bf16 %v345, %v345
        %v352 = vpack.c.bf16 %v348, %v348
        %v353 = vunpack.c.l.bf16 %v349
        %v354 = vunpack.c.l.bf16 %v350
        %v355 = vunpack.c.l.bf16 %v351
        %v356 = vunpack.c.l.bf16 %v352
        %v357 = vsub.f32 %v291, %v353
        %v358 = vsub.f32 %v292, %v354
        %v359 = vsub.f32 %v293, %v355
        %v360 = vsub.f32 %v294, %v356
        %s361 = sadd.s32 %s20, %s21
        %v362 = vlaneseq
        %v363 = vshrl.u32 %v362, 7
        %v364 = vadd.s32 %v363, 8
        %v365 = vadd.s32 %v363, 16
        %v366 = vadd.s32 %v363, 24
        %s367 = smul.u32 %s361, 32
        %v368 = vstv %s367
        %v369 = vadd.s32 %v368, %v363
        %v370 = vadd.s32 %v368, %v364
        %v371 = vadd.s32 %v368, %v365
        %v372 = vadd.s32 %v368, %v366
        %vm373 = vcmp.lt.s32.totalorder %v369, 50
        %vm374 = vcmp.lt.s32.totalorder %v370, 50
        %vm375 = vcmp.lt.s32.totalorder %v371, 50
        %vm376 = vcmp.lt.s32.totalorder %v372, 50
        %v377 = vsel %vm373, 1, 0
        %v378 = vsel %vm374, 1, 0
        %v379 = vsel %vm375, 1, 0
        %v380 = vsel %vm376, 1, 0
        %v381 = vcvt.s32.f32 %v377
        %v382 = vcvt.s32.f32 %v378
        %v383 = vcvt.s32.f32 %v379
        %v384 = vcvt.s32.f32 %v380
        %v385 = vsel %vm373, %v357, 0.0
        %v386 = vsel %vm374, %v358, 0.0
        %v387 = vsel %vm375, %v359, 0.0
        %v388 = vsel %vm376, %v360, 0.0
        %vm389 = vcmp.eq.s32.totalorder %v308, 0
        %v390 = vsel %vm389, %v385, %v381
        %v391 = vsel %vm389, %v386, %v382
        %v392 = vsel %vm389, %v387, %v383
        %v393 = vsel %vm389, %v388, %v384
        %394 = vset.pattern.permute.xlu0 0
        %395 = vperm.xlu0 %394, %v303
        %v396 = vpop.permute.xlu0 %395
        %397 = vset.pattern.permute.xlu0 0
        %398 = vperm.xlu0 %397, %v304
        %v399 = vpop.permute.xlu0 %398
        %400 = vset.pattern.permute.xlu0 0
        %401 = vperm.xlu0 %400, %v305
        %v402 = vpop.permute.xlu0 %401
        %403 = vset.pattern.permute.xlu0 0
        %404 = vperm.xlu0 %403, %v306
        %v405 = vpop.permute.xlu0 %404
        %vm406 = vcmp.eq.s32.totalorder %v396, %v308
        %vm407 = vcmp.eq.s32.totalorder %v399, %v308
        %vm408 = vcmp.eq.s32.totalorder %v402, %v308
        %vm409 = vcmp.eq.s32.totalorder %v405, %v308
        %v410 = vsel %vm406, 1, 0
        %v411 = vsel %vm407, 1, 0
        %v412 = vsel %vm408, 1, 0
        %v413 = vsel %vm409, 1, 0
        %v414 = vcvt.s32.f32 %v410
        %v415 = vcvt.s32.f32 %v411
        %v416 = vcvt.s32.f32 %v412
        %v417 = vcvt.s32.f32 %v413
        %418 = vxpose.xlu0.b32.start [1/16] %v390, 128
        %419 = vxpose.xlu0.b32.cont [2/16] %v391, 128
        %420 = vxpose.xlu0.b32.cont [3/16] %v392, 128
        %421 = vxpose.xlu0.b32.cont [4/16] %v393, 128
        %422 = vxpose.xlu0.b32.cont [5/16] 0.0, 128
        %423 = vxpose.xlu0.b32.cont [6/16] 0.0, 128
        %424 = vxpose.xlu0.b32.cont [7/16] 0.0, 128
        %425 = vxpose.xlu0.b32.cont [8/16] 0.0, 128
        %426 = vxpose.xlu0.b32.cont [9/16] 0.0, 128
        %427 = vxpose.xlu0.b32.cont [10/16] 0.0, 128
        %428 = vxpose.xlu0.b32.cont [11/16] 0.0, 128
        %429 = vxpose.xlu0.b32.cont [12/16] 0.0, 128
        %430 = vxpose.xlu0.b32.cont [13/16] 0.0, 128
        %431 = vxpose.xlu0.b32.cont [14/16] 0.0, 128
        %432 = vxpose.xlu0.b32.cont [15/16] 0.0, 128
        %433 = vxpose.xlu0.b32.end [16/16] 0.0, 128
        %v434 = vpop.trf.xlu0
        %v435 = vpop.trf.xlu0
        %v436 = vpop.trf.xlu0
        %v437 = vpop.trf.xlu0
        %v438 = vpop.trf.xlu0
        %v439 = vpop.trf.xlu0
        %v440 = vpop.trf.xlu0
        %v441 = vpop.trf.xlu0
        %v442 = vpop.trf.xlu0
        %v443 = vpop.trf.xlu0
        %v444 = vpop.trf.xlu0
        %v445 = vpop.trf.xlu0
        %v446 = vpop.trf.xlu0
        %v447 = vpop.trf.xlu0
        %v448 = vpop.trf.xlu0
        %v449 = vpop.trf.xlu0
        %vm450 = vcmask 261120
        %v452 = vsel %vm450, %v434, 0
        %454 = vmatpush.msra.mxu0 0.0
        %455 = vmatpush.msra.mxu0 0.0
        %456 = vmatpush.msra.mxu0 0.0
        %457 = vmatpush.msra.mxu0 0.0
        %458 = vmatpush.msra.mxu0 0.0
        %459 = vmatpush.msra.mxu0 0.0
        %460 = vmatpush.msra.mxu0 0.0
        %461 = vmatpush.msra.mxu0 0.0
        %462 = vmatpush.msra.mxu0 0.0
        %463 = vmatpush.msra.mxu0 0.0
        %464 = vmatpush.msra.mxu0 0.0
        %465 = vmatpush.msra.mxu0 0.0
        %466 = vmatpush.msra.mxu0 %v417
        %467 = vmatpush.msra.mxu0 %v416
        %468 = vmatpush.msra.mxu0 %v415
        %469 = vmatpush.msra.mxu0 %v414
        %470 = vmatmul.f32.gmra.mxu0 %v452
        %v471 = vpop.f32.mrf.mxu0
        %v472 = vadd.f32 0.0, %v471
        %473 = vdwg.mxu0
        %v474 = vld [vmem:[%s199] sm:$0x3]
        %v475 = vadd.f32 %v474, %v472
        %476 = vst [vmem:[%s199] sm:$0x3] %v475
        %s477 = sand.u32 %s92, 1
        %s478 = scalar_lea.sflag [#allocation3], %s477
        %s479 = sand.u32 %s92, 1
        %s480 = smul.addr %s479, 2
        %s481 = scalar_lea.vmem [#allocation2], %s480
        // Predicated region
        $region33: #{tpu_custom_call.1} parent=27 // pred_check
          %p482 = pneg %p102
        $region34: #{tpu_custom_call.1} parent=27 // pred_check_branch
          %484 = sbr.rel (%p482) target = $region36
        $region35: #{tpu_custom_call.1} parent=27 // pred_region
          %486 = vsyncadd %s478, 0
          %s487 = smul.addr %s20, 2
          %s488 = scalar_lea.hbm %s2, %s487
          %s490 = sshll.u32 %s481, 4
          %s491 = int_to_ptr.vmem [resolvable:$true] %s490
          %s492 = sshll.u32 %s488, 4
          %s493 = int_to_ptr.hbm [resolvable:$true] %s492
          %495 = dma.vmem_to_hbm [thread:$0]  %s491, 32, %s493, %s478
        $region36: #{tpu_custom_call.1} parent=27 // pred_fallthru
          _
      $region28: #{tpu_custom_call.1} parent=5 // pred_fallthru
        _
      %p496 = scmp.le.s32.totalorder 2, %s11
      // Predicated region
      $region37: #{tpu_custom_call.1} parent=5 // pred_check
        %p497 = pneg %p496
      $region38: #{tpu_custom_call.1} parent=5 // pred_check_branch
        %499 = sbr.rel (%p497) target = $region40
      $region39: #{tpu_custom_call.1} parent=5 // pred_region
        %s500 = ssub.s32 %s11, 2
        // Predicated region
        $region41: #{tpu_custom_call.1} parent=39 // pred_check
          %p501 = pneg %p108
        $region42: #{tpu_custom_call.1} parent=39 // pred_check_branch
          %503 = sbr.rel (%p501) target = $region44
        $region43: #{tpu_custom_call.1} parent=39 // pred_region
          %s504 = sand.u32 %s93, 1
          %s505 = scalar_lea.sflag [#allocation3], %s504
          %s506 = sand.u32 %s93, 1
          %s507 = smul.addr %s506, 2
          %s508 = scalar_lea.vmem [#allocation2], %s507
          %510 = dma.done %s505, 32
        $region44: #{tpu_custom_call.1} parent=39 // pred_fallthru
          _
      $region40: #{tpu_custom_call.1} parent=5 // pred_fallthru
        _
    $region6: #{tpu_custom_call.1} parent=1 // loop_footer
      %s15 = sadd.s32 1, %s11
    $region7: #{tpu_custom_call.1} parent=1 // loop_footer_branch
      %10 = sbr.rel target = $region3
    $region8: #{tpu_custom_call.1} parent=1 // loop_exit
      _
    %511 = vsyncpa [#allocation3], 1
    %s512 = scalar_lea.sflag [#allocation3], 1
    %513 = vsyncpa %s512, 1

</llo_original>
